<compile_context>
chip_gen: v6e
topology: v6e:2x2x1
jax: 0.10.0
libtpu: 0.0.40
codegen_flags: <defaults>
</compile_context>

<pallas_src>
import functools
import math
from functools import partial

import jax
import jax.numpy as jnp
from jax import lax
from jax.experimental import pallas as pl
from jax.experimental.pallas import tpu as pltpu

_LANES = 128
_SUBLANES = 8
_STRIP_ROWS = 1024          # in-kernel compute strip: ~0.5 MiB per f32 intermediate


def _cdiv(a, b):
    return -(-a // b)


@functools.lru_cache(maxsize=None)
def _vmem_capacity_bytes():
    try:
        info = pltpu.get_tpu_info()
        for attr in ("vmem_capacity_bytes", "vmem_size_bytes", "vmem_bytes"):
            v = getattr(info, attr, None)
            if isinstance(v, int) and v > 0:
                return v
    except Exception:
        pass
    return 64 * 1024 * 1024  # conservative default (v7x-sized VMEM)


@functools.lru_cache(maxsize=None)
def _num_tensorcores():
    """TensorCores a single pallas_call can spread a 'parallel' grid axis over."""
    try:
        info = pltpu.get_tpu_info()
        for attr in ("num_cores", "core_count", "num_tensorcores", "tensorcore_count"):
            v = getattr(info, attr, None)
            if isinstance(v, int) and 0 < v <= 8:
                return v
    except Exception:
        pass
    try:
        kind = jax.devices()[0].device_kind.lower()
        if "lite" not in kind and any(t in kind for t in ("v4", "v5p", "v7", "7x")):
            return 2         # megacore / dual-TensorCore chips
    except Exception:
        pass
    return 1                 # v5e / v6e (single TensorCore) and unknown chips


@functools.lru_cache(maxsize=None)
def _block_bytes_budget():
    # ~4 MiB per input per pipeline buffer; 8 MiB where VMEM is plentiful
    # (v5e/v6e have 128 MiB physical VMEM; v7x only 64 MiB).
    return 8 * 1024 * 1024 if _vmem_capacity_bytes() >= 128 * 1024 * 1024 else 4 * 1024 * 1024


def _combined_loss_kernel(scalars_ref, p_ref, t_ref, o_ref, *,
                          block_rows, bpc, n_blocks, valid_last):
    """Fold one (block_rows, 128) tile of the combined loss into o_ref.

    scalars_ref : SMEM f32[3]            -> [0.5*(1-lambda), lambda, -1/(2*sigma^2)]
    p_ref/t_ref : VMEM (block_rows, 128) -> predicted / target tile (native dtype)
    o_ref       : VMEM f32 (8, 128)      -> per-chunk partial-sum accumulator
                                            (resident across the "arbitrary" axis)
    valid_last  : static valid-row count of the single ragged last block, or None
    """
    c = pl.program_id(0)     # chunk (parallel: split across TensorCores)
    i = pl.program_id(1)     # block within chunk (reduction axis)

    @pl.when(i == 0)
    def _():
        o_ref[...] = jnp.zeros_like(o_ref)

    a = scalars_ref[0]       # 0.5 * (1 - lambda)
    lam = scalars_ref[1]     # lambda
    neg_b = scalars_ref[2]   # -1 / (2 * sigma^2)

    n_full = block_rows // _STRIP_ROWS
    rem = block_rows % _STRIP_ROWS

    def strip(row0, nrows, limit):
        p = p_ref[pl.ds(row0, nrows), :].astype(jnp.float32)
        t = t_ref[pl.ds(row0, nrows), :].astype(jnp.float32)
        d = p - t
        d2 = d * d
        # (1-lam)*0.5*d2 + lam*(1 - exp(-d2/(2 sigma^2))); constants pre-folded on host.
        combined = a * d2 + lam * (1.0 - jnp.exp(d2 * neg_b))
        if limit is not None:
            # Rows past the true extent hold unspecified data: select them away
            # (select, not multiply, so NaN/Inf garbage is dropped).
            row_idx = lax.broadcasted_iota(jnp.int32, combined.shape, 0) + row0
            combined = jnp.where(row_idx < limit, combined, 0.0)
        # VPU-only partial reduction: (nrows, 128) -> (8, 128).
        o_ref[...] += combined.reshape(-1, _SUBLANES, _LANES).sum(axis=0)

    def accumulate(limit):
        if n_full > 0:
            def body(j, carry):
                strip(pl.multiple_of(j * _STRIP_ROWS, _STRIP_ROWS), _STRIP_ROWS, limit)
                return carry
            lax.fori_loop(0, n_full, body, 0)
        if rem > 0:
            strip(n_full * _STRIP_ROWS, rem, limit)

    if valid_last is None:
        accumulate(None)
    else:
        # Only the single ragged block pays for the row mask.
        is_last = (c * bpc + i) == (n_blocks - 1)

        @pl.when(is_last)
        def _():
            accumulate(valid_last)

        @pl.when(jnp.logical_not(is_last))
        def _():
            accumulate(None)


def _launch(p2d, t2d, scalars, n_total, block_rows, n_blocks, n_chunks):
    rows = p2d.shape[0]
    bpc = n_blocks // n_chunks                       # exact by construction (no clamp)
    ragged = rows % block_rows
    valid_last = (rows - (n_blocks - 1) * block_rows) if ragged else None

    kernel = partial(_combined_loss_kernel, block_rows=block_rows, bpc=bpc,
                     n_blocks=n_blocks, valid_last=valid_last)

    def in_map(c, i, s):
        return (c * bpc + i, 0)

    block_bytes = block_rows * _LANES * (p2d.dtype.itemsize + t2d.dtype.itemsize)
    # 2 pipeline buffers per input + headroom for strip intermediates / internal scratch.
    vmem_limit = int(max(32 * 1024 * 1024, 2 * block_bytes + (8 << 20)))

    partials = pl.pallas_call(
        kernel,
        out_shape=jax.ShapeDtypeStruct((n_chunks, _SUBLANES, _LANES), jnp.float32),
        grid_spec=pltpu.PrefetchScalarGridSpec(
            num_scalar_prefetch=1,
            grid=(n_chunks, bpc),
            in_specs=[
                pl.BlockSpec((block_rows, _LANES), in_map),
                pl.BlockSpec((block_rows, _LANES), in_map),
            ],
            out_specs=pl.BlockSpec((None, _SUBLANES, _LANES),
                                   lambda c, i, s: (c, 0, 0)),
        ),
        compiler_params=pltpu.CompilerParams(
            dimension_semantics=("parallel", "arbitrary"),
            vmem_limit_bytes=vmem_limit,
        ),
    )(scalars, p2d, t2d)

    # Single cheap cross-lane reduce + mean normalization outside the hot loop.
    return jnp.sum(partials) / jnp.float32(n_total)


class CombinedLoss:
    """JAX/Pallas port of the PyTorch CombinedLoss module (forward pass)."""

    def __init__(self, sigma=3, lambda_start=0, lambda_end=1, total_steps=10000):
        self.sigma = sigma
        self.lambda_start = lambda_start
        self.lambda_end = lambda_end
        self.total_steps = total_steps
        self.current_step = 0

    def __call__(self, predicted, target):
        assert predicted.shape == target.shape

        lambda_value = self.lambda_start + (self.lambda_end - self.lambda_start) * (
            self.current_step / self.total_steps
        )
        self.current_step += 1

        n_total = int(math.prod(predicted.shape))
        it_p = predicted.dtype.itemsize
        it_t = target.dtype.itemsize
        sub = _SUBLANES * max(1, 4 // min(it_p, it_t))       # 8 (f32) / 16 (bf16) / 32 (i8)

        # Byte-budget-driven, dtype-aware block rows (multiple of the strip size).
        budget_rows = _block_bytes_budget() // (_LANES * max(it_p, it_t))
        budget_rows = max(_STRIP_ROWS, (budget_rows // _STRIP_ROWS) * _STRIP_ROWS)

        rows_lane = _cdiv(n_total, _LANES)                   # rows after (at most) lane padding

        if rows_lane <= budget_rows:
            # Single full-extent block: only needs rows % 8 == 0 for the in-kernel fold.
            rows = _cdiv(rows_lane, _SUBLANES) * _SUBLANES
            block_rows, n_blocks, n_chunks = rows, 1, 1
        else:
            rows = rows_lane                                  # no padding beyond lane alignment
            block_rows = budget_rows
            n_blocks = _cdiv(rows, block_rows)
            n_chunks = 1
            num_tc = _num_tensorcores()
            if num_tc > 1 and n_blocks >= num_tc:
                if n_blocks % num_tc:
                    # Shrink blocks slightly so the block count splits evenly across
                    # TensorCores (no clamped/duplicated block, balanced cores).
                    target_blocks = _cdiv(n_blocks, num_tc) * num_tc
                    br = _cdiv(_cdiv(rows, target_blocks), sub) * sub
                    if br >= sub and _cdiv(rows, br) == target_blocks:
                        block_rows, n_blocks = br, target_blocks
                if n_blocks % num_tc == 0:
                    n_chunks = num_tc

        # Flatten (free for contiguous arrays).  Pad only when the element count is
        # not lane-aligned, or for the tiny single-block sublane rounding.
        p_flat = jnp.ravel(predicted)
        t_flat = jnp.ravel(target)
        padded_len = rows * _LANES
        if padded_len != n_total:
            # Padded zeros contribute exactly 0 to both loss terms.
            # TODO(synk): stream the ragged tail via manual DMA (memory_space=pl.ANY)
            # instead of this pad copy for very large non-lane-aligned inputs.
            pad = padded_len - n_total
            p_flat = jnp.pad(p_flat, (0, pad))
            t_flat = jnp.pad(t_flat, (0, pad))

        p2d = p_flat.reshape(rows, _LANES)
        t2d = t_flat.reshape(rows, _LANES)

        scalars = jnp.array(
            [0.5 * (1.0 - lambda_value),
             lambda_value,
             -1.0 / (2.0 * float(self.sigma) ** 2)],
            dtype=jnp.float32,
        )
        return _launch(p2d, t2d, scalars, n_total, block_rows, n_blocks, n_chunks)


def _reference(predicted, target, sigma, lambda_value):
    d2 = (predicted.astype(jnp.float32) - target.astype(jnp.float32)) ** 2
    eu = 0.5 * d2
    ga = 1.0 - jnp.exp(-d2 / (2.0 * sigma ** 2))
    return ((1.0 - lambda_value) * eu + lambda_value * ga).mean()


if __name__ == "__main__":
    key = jax.random.PRNGKey(0)
    loss_mod = CombinedLoss(sigma=3, lambda_start=0, lambda_end=1, total_steps=10000)

    # Shapes exercise: tiny aligned single block, unaligned (lane-pad) path,
    # 128-aligned zero-copy reshape with a strip tail, and the multi-block path
    # with a ragged, pl.when-gated masked last block (and the even-chunk split
    # on multi-TensorCore chips).
    shapes = [
        (2, 4, 16, 16),
        (3, 5, 7, 9),
        (2, 4, 513, 128),
        (2, 8, 1100, 128),
    ]
    step = 0
    for shape in shapes:
        key, k1, k2 = jax.random.split(key, 3)
        predicted = jax.random.normal(k1, shape, dtype=jnp.float32)
        target = jax.random.normal(k2, shape, dtype=jnp.float32)

        out = loss_mod(predicted, target)
        jax.block_until_ready(out)

        lam = 0.0 + (1.0 - 0.0) * (step / 10000.0)
        ref = _reference(predicted, target, 3.0, lam)
        assert jnp.allclose(out, ref, rtol=5e-5, atol=1e-6), (shape, float(out), float(ref))
        step += 1

    print("KERNEL_OK")
</pallas_src>

<mosaic_0001>
module attributes {stable_mosaic.version = 11 : i64} {
  func.func @_combined_loss_kernel(%arg0: i32, %arg1: i32, %arg2: memref<3xf32, #tpu.memory_space<smem>>, %arg3: memref<16x128xf32, #tpu.memory_space<vmem>>, %arg4: memref<16x128xf32, #tpu.memory_space<vmem>>, %arg5: memref<1x8x128xf32, #tpu.memory_space<vmem>>) attributes {dimension_semantics = [#tpu.dimension_semantics<parallel>, #tpu.dimension_semantics<arbitrary>], iteration_bounds = array<i64: 1, 1>, scalar_prefetch = 1 : i64, scratch_operands = 0 : i64, tpu.core_type = #tpu.core_type<tc>, window_params = [{transform_indices = @transform_0, window_bounds = array<i64: 16, 128>}, {transform_indices = @transform_1, window_bounds = array<i64: 16, 128>}, {transform_indices = @transform_2, window_bounds = array<i64: 1, 8, 128>}]} {
    %c0_i32 = arith.constant 0 : i32
    %0 = arith.cmpi eq, %arg1, %c0_i32 : i32
    %1 = arith.extui %0 : i1 to i32
    %c0_i32_0 = arith.constant 0 : i32
    %2 = arith.cmpi ne, %1, %c0_i32_0 : i32
    scf.if %2 {
      %cst_12 = arith.constant 0.000000e+00 : f32
      %28 = vector.broadcast %cst_12 : f32 to vector<8x128xf32>
      %c0_13 = arith.constant 0 : index
      %c0_14 = arith.constant 0 : index
      %c0_15 = arith.constant 0 : index
      %29 = vector.load %arg5[%c0_13, %c0_14, %c0_15] : memref<1x8x128xf32, #tpu.memory_space<vmem>>, vector<1x8x128xf32>
      %30 = vector.shape_cast %29 : vector<1x8x128xf32> to vector<8x128xf32>
      %31 = vector.shape_cast %28 : vector<8x128xf32> to vector<1x8x128xf32>
      tpu.vector_store %arg5[%c0_13, %c0_14, %c0_15], %31 {strides = array<i32>} : memref<1x8x128xf32, #tpu.memory_space<vmem>>, vector<1x8x128xf32>,
    } else {
    }
    %c0 = arith.constant 0 : index
    %3 = memref.load %arg2[%c0] : memref<3xf32, #tpu.memory_space<smem>>
    %c1 = arith.constant 1 : index
    %4 = memref.load %arg2[%c1] : memref<3xf32, #tpu.memory_space<smem>>
    %c2 = arith.constant 2 : index
    %5 = memref.load %arg2[%c2] : memref<3xf32, #tpu.memory_space<smem>>
    %c0_1 = arith.constant 0 : index
    %c0_2 = arith.constant 0 : index
    %6 = vector.load %arg3[%c0_1, %c0_2] : memref<16x128xf32, #tpu.memory_space<vmem>>, vector<16x128xf32>
    %c0_3 = arith.constant 0 : index
    %c0_4 = arith.constant 0 : index
    %7 = vector.load %arg4[%c0_3, %c0_4] : memref<16x128xf32, #tpu.memory_space<vmem>>, vector<16x128xf32>
    %8 = arith.subf %6, %7 : vector<16x128xf32>
    %9 = arith.mulf %8, %8 : vector<16x128xf32>
    %10 = vector.broadcast %3 : f32 to vector<16x128xf32>
    %11 = arith.mulf %10, %9 : vector<16x128xf32>
    %12 = vector.broadcast %5 : f32 to vector<16x128xf32>
    %13 = arith.mulf %9, %12 : vector<16x128xf32>
    %14 = math.exp %13 : vector<16x128xf32>
    %cst = arith.constant 1.000000e+00 : f32
    %15 = vector.broadcast %cst : f32 to vector<16x128xf32>
    %16 = arith.subf %15, %14 : vector<16x128xf32>
    %17 = vector.broadcast %4 : f32 to vector<16x128xf32>
    %18 = arith.mulf %17, %16 : vector<16x128xf32>
    %19 = arith.addf %11, %18 : vector<16x128xf32>
    %c0_5 = arith.constant 0 : index
    %c0_6 = arith.constant 0 : index
    %c0_7 = arith.constant 0 : index
    %20 = vector.load %arg5[%c0_5, %c0_6, %c0_7] : memref<1x8x128xf32, #tpu.memory_space<vmem>>, vector<1x8x128xf32>
    %21 = vector.shape_cast %20 : vector<1x8x128xf32> to vector<8x128xf32>
    %22 = vector.shape_cast %19 : vector<16x128xf32> to vector<2x8x128xf32>
    %cst_8 = arith.constant dense<0.000000e+00> : vector<8x128xf32>
    %23 = vector.multi_reduction <add>, %22, %cst_8 [0] : vector<2x8x128xf32> to vector<8x128xf32>
    %24 = arith.addf %21, %23 : vector<8x128xf32>
    %c0_9 = arith.constant 0 : index
    %c0_10 = arith.constant 0 : index
    %c0_11 = arith.constant 0 : index
    %25 = vector.load %arg5[%c0_9, %c0_10, %c0_11] : memref<1x8x128xf32, #tpu.memory_space<vmem>>, vector<1x8x128xf32>
    %26 = vector.shape_cast %25 : vector<1x8x128xf32> to vector<8x128xf32>
    %27 = vector.shape_cast %24 : vector<8x128xf32> to vector<1x8x128xf32>
    tpu.vector_store %arg5[%c0_9, %c0_10, %c0_11], %27 {strides = array<i32>} : memref<1x8x128xf32, #tpu.memory_space<vmem>>, vector<1x8x128xf32>,
    return
  }
  func.func @transform_0(%arg0: i32, %arg1: i32, %arg2: memref<3xf32, #tpu.memory_space<smem>>) -> (i32, i32) {
    %c1_i32 = arith.constant 1 : i32
    %0 = arith.muli %arg0, %c1_i32 : i32
    %1 = arith.addi %0, %arg1 : i32
    %c0_i32 = arith.constant 0 : i32
    %c0_i32_0 = arith.constant 0 : i32
    return %1, %c0_i32 : i32, i32
  }
  func.func @transform_1(%arg0: i32, %arg1: i32, %arg2: memref<3xf32, #tpu.memory_space<smem>>) -> (i32, i32) {
    %c1_i32 = arith.constant 1 : i32
    %0 = arith.muli %arg0, %c1_i32 : i32
    %1 = arith.addi %0, %arg1 : i32
    %c0_i32 = arith.constant 0 : i32
    %c0_i32_0 = arith.constant 0 : i32
    return %1, %c0_i32 : i32, i32
  }
  func.func @transform_2(%arg0: i32, %arg1: i32, %arg2: memref<3xf32, #tpu.memory_space<smem>>) -> (i32, i32, i32) {
    %c0_i32 = arith.constant 0 : i32
    %c0_i32_0 = arith.constant 0 : i32
    %c0_i32_1 = arith.constant 0 : i32
    return %arg0, %c0_i32, %c0_i32_0 : i32, i32, i32
  }
}

</mosaic_0001>

<llo_original>
// kernel: tpu_custom_call.1
$region0: #{tpu_custom_call.1}
  #allocation0 [shape = 'u32[]', space=smem, size = 0x4, offset = 0x4, fixed_abs, tag = 'smem constant byte address 0x4 - core index']
  #allocation1 [shape = 'u32[144,128]{1,0:T(1,128)}', space=vmem, size = 0x12000, scoped, tag = 'internal scratch']
  #allocation2 [shape = 's32[1]{0}', space=sflag, size = 0x4, scoped, tag = 'scoped memory for tpu_custom_call.1']
  #allocation3 [shape = 'u8[512]{0}', space=smem, size = 0x200, scoped, tag = 'prefetched SMEM operand 0']
  %s0 = inlined_call_operand.hbm [shape: f32[3], index: 0, kind: input, shape index: {}]
  %s1 = inlined_call_operand.hbm [shape: f32[16,128], index: 1, kind: input, shape index: {}]
  %s2 = inlined_call_operand.hbm [shape: f32[16,128], index: 2, kind: input, shape index: {}]
  %s3 = inlined_call_operand.hbm [shape: f32[1,8,128], index: 3, kind: output, shape index: {}]
  %s4 = sld [smem:[#allocation0]]
  $region30: #{tpu_custom_call.1} parent=0
    _
  %s6 = ssub.s32 1, %s4
  %s7 = scalar_select 0, %s6, %s4
  %9 = dma.hbm_to_smem %s0, 16, [#allocation3], [#allocation2]
  %10 = dma.done [#allocation2], 16
  %11 = sfence
  $region1: #{tpu_custom_call.1} parent=0
    #allocation4 [shape = 'u8[8192]{0}', space=vmem, size = 0x2000, scoped, tag = 'input window, operand 1, single buffered']
    #allocation5 [shape = 's32[1]{0}', space=sflag, size = 0x4, scoped, tag = 'scoped memory for tpu_custom_call.1']
    #allocation6 [shape = 's32[1]{0}', space=sflag, size = 0x4, scoped, tag = 'scoped memory for tpu_custom_call.1']
    #allocation7 [shape = 'u8[8192]{0}', space=vmem, size = 0x2000, scoped, tag = 'input window, operand 2, single buffered']
    #allocation8 [shape = 's32[1]{0}', space=sflag, size = 0x4, scoped, tag = 'scoped memory for tpu_custom_call.1']
    #allocation9 [shape = 'u8[4096]{0}', space=vmem, size = 0x1000, scoped, tag = 'output window, operand 0, single buffered']
    %12 = vsyncpa [#allocation5], 0
    %13 = vsyncpa [#allocation8], 0
    %14 = vsyncpa [#allocation6], 0
    // Predicated region
    $region2: #{tpu_custom_call.1} parent=1 // pred_check
      _
    $region3: #{tpu_custom_call.1} parent=1 // pred_check_branch
      %16 = sbr.rel (0) target = $region5
    $region4: #{tpu_custom_call.1} parent=1 // pred_region
      %s17 = sadd.s32 0, 0
      %s18 = smul.u32 2, %s17
      %s20 = ssub.s32 256, 256
      %21 = vsyncadd [#allocation5], %s20
      %s22 = smul.addr %s18, 128
      %s23 = scalar_lea.hbm %s1, %s22
      %s24 = sshll.u32 [#allocation4], 4
      %s25 = int_to_ptr.vmem [resolvable:$true] %s24
      %30 = dma.hbm_to_vmem [thread:$0]  %s23, 256, %s25, [#allocation5], 128, 128, 8
    $region5: #{tpu_custom_call.1} parent=1 // pred_fallthru
      _
    // Predicated region
    $region6: #{tpu_custom_call.1} parent=1 // pred_check
      _
    $region7: #{tpu_custom_call.1} parent=1 // pred_check_branch
      %32 = sbr.rel (0) target = $region9
    $region8: #{tpu_custom_call.1} parent=1 // pred_region
      %s33 = sadd.s32 0, 0
      %s34 = smul.u32 2, %s33
      %s36 = ssub.s32 256, 256
      %37 = vsyncadd [#allocation8], %s36
      %s38 = smul.addr %s34, 128
      %s39 = scalar_lea.hbm %s2, %s38
      %s40 = sshll.u32 [#allocation7], 4
      %s41 = int_to_ptr.vmem [resolvable:$true] %s40
      %46 = dma.hbm_to_vmem [thread:$0]  %s39, 256, %s41, [#allocation8], 128, 128, 8
    $region9: #{tpu_custom_call.1} parent=1 // pred_fallthru
      _
    // Predicated region
    $region10: #{tpu_custom_call.1} parent=1 // pred_check
      _
    $region11: #{tpu_custom_call.1} parent=1 // pred_check_branch
      %48 = sbr.rel (0) target = $region13
    $region12: #{tpu_custom_call.1} parent=1 // pred_region
      %49 = dma.done [#allocation5], 256
    $region13: #{tpu_custom_call.1} parent=1 // pred_fallthru
      _
    // Predicated region
    $region14: #{tpu_custom_call.1} parent=1 // pred_check
      _
    $region15: #{tpu_custom_call.1} parent=1 // pred_check_branch
      %51 = sbr.rel (0) target = $region17
    $region16: #{tpu_custom_call.1} parent=1 // pred_region
      %52 = dma.done [#allocation8], 256
    $region17: #{tpu_custom_call.1} parent=1 // pred_fallthru
      _
    %s53 = sadd.s32 0, 0
    %s54 = smul.u32 2, %s53
    %s55 = sadd.s32 0, 0
    %s56 = smul.u32 2, %s55
    %p57 = scmp.eq.s32.totalorder 0, 0
    // Predicated region
    $region18: #{tpu_custom_call.1} parent=1 // pred_check
      %p58 = pneg %p57
    $region19: #{tpu_custom_call.1} parent=1 // pred_check_branch
      %60 = sbr.rel (%p58) target = $region21
    $region20: #{tpu_custom_call.1} parent=1 // pred_region
      %61 = vst [vmem:[#allocation9] sm:$0xff] 0.0
    $region21: #{tpu_custom_call.1} parent=1 // pred_fallthru
      _
    %s62 = sld [smem:[#allocation3]]
    %s63 = sld [smem:[#allocation3 + $0x1]]
    %s64 = sld [smem:[#allocation3 + $0x2]]
    %v65 = vld [vmem:[#allocation4] sm:$0xff]
    %v66 = vld [vmem:[#allocation4 + $0x8] sm:$0xff]
    %v67 = vld [vmem:[#allocation7] sm:$0xff]
    %v68 = vld [vmem:[#allocation7 + $0x8] sm:$0xff]
    %v69 = vsub.f32 %v65, %v67
    %v70 = vsub.f32 %v66, %v68
    %v71 = vmul.f32 %v69, %v69
    %v72 = vmul.f32 %v70, %v70
    %v73 = vstv %s62
    %v74 = vmul.f32 %v73, %v71
    %v75 = vmul.f32 %v73, %v72
    %v76 = vstv %s64
    %v77 = vmul.f32 %v71, %v76
    %v78 = vmul.f32 %v72, %v76
    %v79 = vmul.f32 %v77, 1.442695
    %v80 = vpow.pop %v79
    %v81 = vmul.f32 %v78, 1.442695
    %v82 = vpow.pop %v81
    %v83 = vsub.f32 1.0, %v80
    %v84 = vsub.f32 1.0, %v82
    %v85 = vstv %s63
    %v86 = vmul.f32 %v85, %v83
    %v87 = vmul.f32 %v85, %v84
    %v88 = vadd.f32 %v74, %v86
    %v89 = vadd.f32 %v75, %v87
    %v90 = vld [vmem:[#allocation9] sm:$0xff]
    %v91 = vadd.f32 %v88, %v89
    %v92 = vadd.f32 %v90, %v91
    %93 = vst [vmem:[#allocation9] sm:$0xff] %v92
    // Predicated region
    $region22: #{tpu_custom_call.1} parent=1 // pred_check
      _
    $region23: #{tpu_custom_call.1} parent=1 // pred_check_branch
      %95 = sbr.rel (0) target = $region25
    $region24: #{tpu_custom_call.1} parent=1 // pred_region
      %s97 = ssub.s32 128, 128
      %98 = vsyncadd [#allocation6], %s97
      %s100 = sshll.u32 [#allocation9], 4
      %s101 = int_to_ptr.vmem [resolvable:$true] %s100
      %103 = dma.vmem_to_hbm [thread:$0]  %s101, 128, %s3, [#allocation6]
    $region25: #{tpu_custom_call.1} parent=1 // pred_fallthru
      _
    // Predicated region
    $region26: #{tpu_custom_call.1} parent=1 // pred_check
      _
    $region27: #{tpu_custom_call.1} parent=1 // pred_check_branch
      %105 = sbr.rel (0) target = $region29
    $region28: #{tpu_custom_call.1} parent=1 // pred_region
      %106 = dma.done [#allocation6], 128
    $region29: #{tpu_custom_call.1} parent=1 // pred_fallthru
      _
    %107 = vsyncpa [#allocation5], 1
    %108 = vsyncpa [#allocation8], 1
    %109 = vsyncpa [#allocation6], 1

</llo_original>
